<compile_context>
chip_gen: v5e
topology: v5e:2x2
jax: 0.10.0
libtpu: 0.0.40
codegen_flags: <defaults>
</compile_context>

<pallas_src>
import functools
import math

import jax
import jax.numpy as jnp
import numpy as np
from jax.experimental import pallas as pl
from jax.experimental.pallas import tpu as pltpu


def _vmem_capacity_bytes():
    """Physical VMEM of the local chip; conservative (v7x) fallback."""
    try:
        return int(pltpu.get_tpu_info().vmem_capacity_bytes)
    except Exception:
        return 64 * 1024 * 1024


def _pick_seq_tile(S, target):
    """Largest divisor of S that is a multiple of 8 and <= target, else S.

    Falling back to S itself is always layout-legal (full-dim blocks bypass
    the (8, 128) divisibility requirement).
    """
    if S <= target:
        return S
    best = None
    for t in range(8, target + 1, 8):
        if S % t == 0:
            best = t
    return best if best is not None else S


def _choose_batch_block(B, S, D, tq, tk, itemsize, budget_bytes):
    """Largest divisor Bb of B whose per-step working set fits the VMEM budget
    while keeping the grid multi-step (pipelining + v7x two-TC split)."""
    n_q, n_k = S // tq, S // tk

    def per_step_bytes(bb):
        # double-buffered q/out (tq-sized) and k/v (tk-sized) tiles
        io = 2 * (2 * bb * tq * D + 2 * bb * tk * D) * itemsize
        # f32 scratch: m, l, acc
        scratch = bb * tq * (2 + D) * 4
        # f32 score-tile temporaries (qk / p / exp) + low-precision copy of p
        tmp = 3 * bb * tq * tk * 4 + bb * tq * tk * itemsize
        return io + scratch + tmp

    divisors = [d for d in range(1, B + 1) if B % d == 0]
    fitting = [d for d in divisors if per_step_bytes(d) <= budget_bytes] or [1]
    max_steps = B * n_q * n_k          # grid size at Bb == 1
    min_steps = min(8, max_steps)      # never demand more steps than exist
    multi_step = [d for d in fitting if (B // d) * n_q * n_k >= min_steps]
    return max(multi_step) if multi_step else max(fitting)


def _sdpa_flash_kernel(q_ref, k_ref, v_ref, o_ref, m_ref, l_ref, acc_ref, *,
                       activation, scale, compute_dtype):
    ki = pl.program_id(2)

    @pl.when(ki == 0)
    def _init():
        if activation == "softmax":
            m_ref[...] = jnp.full(m_ref.shape, -jnp.inf, m_ref.dtype)
            l_ref[...] = jnp.zeros(l_ref.shape, l_ref.dtype)
        acc_ref[...] = jnp.zeros(acc_ref.shape, acc_ref.dtype)

    q = q_ref[...]                               # (Bb, tq, D)
    k = k_ref[...]                               # (Bb, tk, D)
    v = v_ref[...]                               # (Bb, tk, D)
    if compute_dtype is not None:
        q = q.astype(compute_dtype)
        k = k.astype(compute_dtype)
        v = v.astype(compute_dtype)

    # qk[b, i, j] = sum_d q[b, i, d] * k[b, j, d] -- last-dim contraction, no
    # K transpose materialized; f32 accumulation on the MXU.
    qk = jnp.einsum("bqd,bkd->bqk", q, k,
                    preferred_element_type=jnp.float32)      # (Bb, tq, tk) f32

    if activation == "softmax":
        m_prev = m_ref[...]
        m_new = jnp.maximum(m_prev, jnp.max(qk, axis=-1, keepdims=True))
        alpha = jnp.exp(m_prev - m_new)
        p = jnp.exp(qk - m_new)
        l_ref[...] = alpha * l_ref[...] + jnp.sum(p, axis=-1, keepdims=True)
        acc_ref[...] = alpha * acc_ref[...] + jnp.einsum(
            "bqk,bkd->bqd", p.astype(v.dtype), v,
            preferred_element_type=jnp.float32)
        m_ref[...] = m_new
    elif activation == "sigmoid":
        # Elementwise activation: plain accumulation over Sk tiles, no
        # online rescaling needed.
        p = jax.nn.sigmoid(qk)
        acc_ref[...] += jnp.einsum(
            "bqk,bkd->bqd", p.astype(v.dtype), v,
            preferred_element_type=jnp.float32)
    else:
        raise ValueError("unknown activation:" + str(activation))

    @pl.when(ki == pl.num_programs(2) - 1)
    def _finalize():
        if activation == "softmax":
            # Post-activation scale folded into the softmax normalization:
            # y = (acc / l) * scale  ->  acc * (scale / l), a (tq, 1) broadcast.
            # Exact divide (not approx reciprocal) for numerical parity.
            o_ref[...] = (acc_ref[...] * (scale / l_ref[...])).astype(o_ref.dtype)
        else:
            o_ref[...] = (acc_ref[...] * scale).astype(o_ref.dtype)


def scaled_dot_product_attention(q, k, v, activation="softmax", *,
                                 use_bf16_matmul=False):
    """q, k, v: (B, S, D) arrays. Returns (B, S, D), matching the torch module."""
    B, S, D = q.shape
    assert k.shape == (B, S, D) and v.shape == (B, S, D)
    scale = 1.0 / math.sqrt(D)      # 1 / sqrt(q.shape[2]), applied post-activation
    itemsize = jnp.dtype(q.dtype).itemsize

    # Generation-aware VMEM sizing (v7x: 64 MiB physical, v5e/v6e: 128 MiB).
    vmem_cap = _vmem_capacity_bytes()
    vmem_limit = min(int(vmem_cap * 0.75), 112 * 1024 * 1024)
    budget = int(vmem_cap * 0.45)

    # Sq / Sk tiles: MXU-friendly targets (multiples of 256 on v6e/v7x);
    # small S just uses full-extent blocks, which are always legal.
    tq = _pick_seq_tile(S, 256)
    tk = _pick_seq_tile(S, 512)
    Bb = _choose_batch_block(B, S, D, tq, tk, itemsize, budget)

    grid = (B // Bb, S // tq, S // tk)
    compute_dtype = (jnp.bfloat16
                     if (use_bf16_matmul and q.dtype == jnp.float32) else None)

    kernel = functools.partial(_sdpa_flash_kernel, activation=activation,
                               scale=scale, compute_dtype=compute_dtype)

    cost = pl.CostEstimate(
        flops=4 * B * S * S * D,                    # two matmuls, 2 flops/MAC
        transcendentals=B * S * S,                  # exp / logistic per score
        bytes_accessed=4 * B * S * D * itemsize)    # q, k, v in + y out

    # TODO(synk): for head_dim < 128 the output writeback is a masked partial
    # store; pack multiple heads per call in the wrapper for lane-dense stores.
    return pl.pallas_call(
        kernel,
        out_shape=jax.ShapeDtypeStruct((B, S, D), q.dtype),
        grid=grid,
        in_specs=[
            pl.BlockSpec((Bb, tq, D), lambda b, qi, ki: (b, qi, 0)),
            pl.BlockSpec((Bb, tk, D), lambda b, qi, ki: (b, ki, 0)),
            pl.BlockSpec((Bb, tk, D), lambda b, qi, ki: (b, ki, 0)),
        ],
        out_specs=pl.BlockSpec((Bb, tq, D), lambda b, qi, ki: (b, qi, 0)),
        scratch_shapes=[
            pltpu.VMEM((Bb, tq, 1), jnp.float32),   # running max m
            pltpu.VMEM((Bb, tq, 1), jnp.float32),   # running denominator l
            pltpu.VMEM((Bb, tq, D), jnp.float32),   # output accumulator
        ],
        compiler_params=pltpu.CompilerParams(
            dimension_semantics=("parallel", "parallel", "arbitrary"),
            vmem_limit_bytes=vmem_limit),
        cost_estimate=cost,
    )(q, k, v)


def _reference(q, k, v, activation):
    # Pure-JAX reference mirroring the PyTorch forward exactly.
    qk = jnp.einsum("bqd,bkd->bqk", q, k)
    if activation == "softmax":
        w = jax.nn.softmax(qk, axis=2)
    else:
        w = jax.nn.sigmoid(qk)
    w = w * (1.0 / np.sqrt(q.shape[2]))
    return jnp.einsum("bqk,bkd->bqd", w, v)


if __name__ == "__main__":
    # Small deterministic shapes: batch=2, seq=8, hidden=32.
    B, S, D = 2, 8, 32
    key = jax.random.PRNGKey(0)
    kq, kk, kv = jax.random.split(key, 3)
    q = jax.random.normal(kq, (B, S, D), dtype=jnp.float32)
    k = jax.random.normal(kk, (B, S, D), dtype=jnp.float32)
    v = jax.random.normal(kv, (B, S, D), dtype=jnp.float32)

    ok = True
    for act in ("softmax", "sigmoid"):
        y = scaled_dot_product_attention(q, k, v, activation=act)
        y = jax.block_until_ready(y)
        y_ref = _reference(q, k, v, act)
        if not np.allclose(np.asarray(y), np.asarray(y_ref), atol=1e-4, rtol=1e-4):
            ok = False
            print(f"MISMATCH for activation={act}")

    if ok:
        print("KERNEL_OK")
</pallas_src>

<mosaic_0001>
module attributes {stable_mosaic.version = 11 : i64} {
  func.func @_sdpa_flash_kernel(%arg0: i32, %arg1: i32, %arg2: i32, %arg3: memref<1x8x32xf32, #tpu.memory_space<vmem>>, %arg4: memref<1x8x32xf32, #tpu.memory_space<vmem>>, %arg5: memref<1x8x32xf32, #tpu.memory_space<vmem>>, %arg6: memref<1x8x32xf32, #tpu.memory_space<vmem>>, %arg7: memref<1x8x1xf32, #tpu.memory_space<vmem>>, %arg8: memref<1x8x1xf32, #tpu.memory_space<vmem>>, %arg9: memref<1x8x32xf32, #tpu.memory_space<vmem>>) attributes {dimension_semantics = [#tpu.dimension_semantics<parallel>, #tpu.dimension_semantics<parallel>, #tpu.dimension_semantics<arbitrary>], iteration_bounds = array<i64: 2, 1, 1>, scalar_prefetch = 0 : i64, scratch_operands = 3 : i64, tpu.core_type = #tpu.core_type<tc>, window_params = [{transform_indices = @transform_0, window_bounds = array<i64: 1, 8, 32>}, {transform_indices = @transform_1, window_bounds = array<i64: 1, 8, 32>}, {transform_indices = @transform_2, window_bounds = array<i64: 1, 8, 32>}, {transform_indices = @transform_3, window_bounds = array<i64: 1, 8, 32>}]} {
    %c0_i32 = arith.constant 0 : i32
    %0 = arith.cmpi eq, %arg2, %c0_i32 : i32
    %1 = arith.extui %0 : i1 to i32
    %c0_i32_0 = arith.constant 0 : i32
    %2 = arith.cmpi ne, %1, %c0_i32_0 : i32
    scf.if %2 {
      %cst_32 = arith.constant 0xFF800000 : f32
      %32 = vector.broadcast %cst_32 : f32 to vector<1x8x1xf32>
      %c0_33 = arith.constant 0 : index
      %c0_34 = arith.constant 0 : index
      %c0_35 = arith.constant 0 : index
      %33 = vector.load %arg7[%c0_33, %c0_34, %c0_35] : memref<1x8x1xf32, #tpu.memory_space<vmem>>, vector<1x8x1xf32>
      tpu.vector_store %arg7[%c0_33, %c0_34, %c0_35], %32 {strides = array<i32>} : memref<1x8x1xf32, #tpu.memory_space<vmem>>, vector<1x8x1xf32>,
      %cst_36 = arith.constant 0.000000e+00 : f32
      %34 = vector.broadcast %cst_36 : f32 to vector<1x8x1xf32>
      %c0_37 = arith.constant 0 : index
      %c0_38 = arith.constant 0 : index
      %c0_39 = arith.constant 0 : index
      %35 = vector.load %arg8[%c0_37, %c0_38, %c0_39] : memref<1x8x1xf32, #tpu.memory_space<vmem>>, vector<1x8x1xf32>
      tpu.vector_store %arg8[%c0_37, %c0_38, %c0_39], %34 {strides = array<i32>} : memref<1x8x1xf32, #tpu.memory_space<vmem>>, vector<1x8x1xf32>,
      %cst_40 = arith.constant 0.000000e+00 : f32
      %36 = vector.broadcast %cst_40 : f32 to vector<1x8x32xf32>
      %c0_41 = arith.constant 0 : index
      %c0_42 = arith.constant 0 : index
      %c0_43 = arith.constant 0 : index
      %37 = vector.load %arg9[%c0_41, %c0_42, %c0_43] : memref<1x8x32xf32, #tpu.memory_space<vmem>>, vector<1x8x32xf32>
      tpu.vector_store %arg9[%c0_41, %c0_42, %c0_43], %36 {strides = array<i32>} : memref<1x8x32xf32, #tpu.memory_space<vmem>>, vector<1x8x32xf32>,
    } else {
    }
    %c0 = arith.constant 0 : index
    %c0_1 = arith.constant 0 : index
    %c0_2 = arith.constant 0 : index
    %3 = vector.load %arg3[%c0, %c0_1, %c0_2] : memref<1x8x32xf32, #tpu.memory_space<vmem>>, vector<1x8x32xf32>
    %c0_3 = arith.constant 0 : index
    %c0_4 = arith.constant 0 : index
    %c0_5 = arith.constant 0 : index
    %4 = vector.load %arg4[%c0_3, %c0_4, %c0_5] : memref<1x8x32xf32, #tpu.memory_space<vmem>>, vector<1x8x32xf32>
    %c0_6 = arith.constant 0 : index
    %c0_7 = arith.constant 0 : index
    %c0_8 = arith.constant 0 : index
    %5 = vector.load %arg5[%c0_6, %c0_7, %c0_8] : memref<1x8x32xf32, #tpu.memory_space<vmem>>, vector<1x8x32xf32>
    "tpu.trace_start"() <{level = 10 : i32, message = "bqd,bkd->bqk"}> : () -> ()
    %cst = arith.constant dense<0.000000e+00> : vector<1x8x8xf32>
    %6 = tpu.matmul %3, %4, %cst {dimension_numbers = #tpu.dot_dimension_numbers<[2], [2], [1], [1], [0, 0, 0, 1, 1, 1], [0], [0]>} : vector<1x8x32xf32>, vector<1x8x32xf32>, vector<1x8x8xf32> -> vector<1x8x8xf32>
    "tpu.trace_stop"() : () -> ()
    %c0_9 = arith.constant 0 : index
    %c0_10 = arith.constant 0 : index
    %c0_11 = arith.constant 0 : index
    %7 = vector.load %arg7[%c0_9, %c0_10, %c0_11] : memref<1x8x1xf32, #tpu.memory_space<vmem>>, vector<1x8x1xf32>
    %cst_12 = arith.constant dense<0xFF800000> : vector<1x8xf32>
    %8 = vector.multi_reduction <maximumf>, %6, %cst_12 [2] : vector<1x8x8xf32> to vector<1x8xf32>
    %9 = vector.shape_cast %8 : vector<1x8xf32> to vector<1x8x1xf32>
    %10 = arith.maximumf %7, %9 : vector<1x8x1xf32>
    %11 = arith.subf %7, %10 : vector<1x8x1xf32>
    %12 = math.exp %11 : vector<1x8x1xf32>
    %13 = vector.broadcast %10 : vector<1x8x1xf32> to vector<1x8x8xf32>
    %14 = arith.subf %6, %13 : vector<1x8x8xf32>
    %15 = math.exp %14 : vector<1x8x8xf32>
    %c0_13 = arith.constant 0 : index
    %c0_14 = arith.constant 0 : index
    %c0_15 = arith.constant 0 : index
    %16 = vector.load %arg8[%c0_13, %c0_14, %c0_15] : memref<1x8x1xf32, #tpu.memory_space<vmem>>, vector<1x8x1xf32>
    %17 = arith.mulf %12, %16 : vector<1x8x1xf32>
    %cst_16 = arith.constant dense<0.000000e+00> : vector<1x8xf32>
    %18 = vector.multi_reduction <add>, %15, %cst_16 [2] : vector<1x8x8xf32> to vector<1x8xf32>
    %19 = vector.shape_cast %18 : vector<1x8xf32> to vector<1x8x1xf32>
    %20 = arith.addf %17, %19 : vector<1x8x1xf32>
    %c0_17 = arith.constant 0 : index
    %c0_18 = arith.constant 0 : index
    %c0_19 = arith.constant 0 : index
    %21 = vector.load %arg8[%c0_17, %c0_18, %c0_19] : memref<1x8x1xf32, #tpu.memory_space<vmem>>, vector<1x8x1xf32>
    tpu.vector_store %arg8[%c0_17, %c0_18, %c0_19], %20 {strides = array<i32>} : memref<1x8x1xf32, #tpu.memory_space<vmem>>, vector<1x8x1xf32>,
    %c0_20 = arith.constant 0 : index
    %c0_21 = arith.constant 0 : index
    %c0_22 = arith.constant 0 : index
    %22 = vector.load %arg9[%c0_20, %c0_21, %c0_22] : memref<1x8x32xf32, #tpu.memory_space<vmem>>, vector<1x8x32xf32>
    %23 = vector.broadcast %12 : vector<1x8x1xf32> to vector<1x8x32xf32>
    %24 = arith.mulf %23, %22 : vector<1x8x32xf32>
    "tpu.trace_start"() <{level = 10 : i32, message = "bqk,bkd->bqd"}> : () -> ()
    %cst_23 = arith.constant dense<0.000000e+00> : vector<1x8x32xf32>
    %25 = tpu.matmul %15, %5, %cst_23 {dimension_numbers = #tpu.dot_dimension_numbers<[2], [1], [1], [2], [0, 0, 0, 1, 1, 2], [0], [0]>} : vector<1x8x8xf32>, vector<1x8x32xf32>, vector<1x8x32xf32> -> vector<1x8x32xf32>
    "tpu.trace_stop"() : () -> ()
    %26 = arith.addf %24, %25 : vector<1x8x32xf32>
    %c0_24 = arith.constant 0 : index
    %c0_25 = arith.constant 0 : index
    %c0_26 = arith.constant 0 : index
    %27 = vector.load %arg9[%c0_24, %c0_25, %c0_26] : memref<1x8x32xf32, #tpu.memory_space<vmem>>, vector<1x8x32xf32>
    tpu.vector_store %arg9[%c0_24, %c0_25, %c0_26], %26 {strides = array<i32>} : memref<1x8x32xf32, #tpu.memory_space<vmem>>, vector<1x8x32xf32>,
    %c0_27 = arith.constant 0 : index
    %c0_28 = arith.constant 0 : index
    %c0_29 = arith.constant 0 : index
    %28 = vector.load %arg7[%c0_27, %c0_28, %c0_29] : memref<1x8x1xf32, #tpu.memory_space<vmem>>, vector<1x8x1xf32>
    tpu.vector_store %arg7[%c0_27, %c0_28, %c0_29], %10 {strides = array<i32>} : memref<1x8x1xf32, #tpu.memory_space<vmem>>, vector<1x8x1xf32>,
    %c0_i32_30 = arith.constant 0 : i32
    %29 = arith.cmpi eq, %arg2, %c0_i32_30 : i32
    %30 = arith.extui %29 : i1 to i32
    %c0_i32_31 = arith.constant 0 : i32
    %31 = arith.cmpi ne, %30, %c0_i32_31 : i32
    scf.if %31 {
      %c0_32 = arith.constant 0 : index
      %c0_33 = arith.constant 0 : index
      %c0_34 = arith.constant 0 : index
      %32 = vector.load %arg9[%c0_32, %c0_33, %c0_34] : memref<1x8x32xf32, #tpu.memory_space<vmem>>, vector<1x8x32xf32>
      %c0_35 = arith.constant 0 : index
      %c0_36 = arith.constant 0 : index
      %c0_37 = arith.constant 0 : index
      %33 = vector.load %arg8[%c0_35, %c0_36, %c0_37] : memref<1x8x1xf32, #tpu.memory_space<vmem>>, vector<1x8x1xf32>
      %cst_38 = arith.constant 0.176776692 : f32
      %34 = vector.broadcast %cst_38 : f32 to vector<1x8x1xf32>
      %35 = arith.divf %34, %33 : vector<1x8x1xf32>
      %36 = vector.broadcast %35 : vector<1x8x1xf32> to vector<1x8x32xf32>
      %37 = arith.mulf %32, %36 : vector<1x8x32xf32>
      %c0_39 = arith.constant 0 : index
      %c0_40 = arith.constant 0 : index
      %c0_41 = arith.constant 0 : index
      %38 = vector.load %arg6[%c0_39, %c0_40, %c0_41] : memref<1x8x32xf32, #tpu.memory_space<vmem>>, vector<1x8x32xf32>
      tpu.vector_store %arg6[%c0_39, %c0_40, %c0_41], %37 {strides = array<i32>} : memref<1x8x32xf32, #tpu.memory_space<vmem>>, vector<1x8x32xf32>,
    } else {
    }
    return
  }
  func.func @transform_0(%arg0: i32, %arg1: i32, %arg2: i32) -> (i32, i32, i32) {
    %c0_i32 = arith.constant 0 : i32
    %c0_i32_0 = arith.constant 0 : i32
    return %arg0, %arg1, %c0_i32 : i32, i32, i32
  }
  func.func @transform_1(%arg0: i32, %arg1: i32, %arg2: i32) -> (i32, i32, i32) {
    %c0_i32 = arith.constant 0 : i32
    %c0_i32_0 = arith.constant 0 : i32
    return %arg0, %arg2, %c0_i32 : i32, i32, i32
  }
  func.func @transform_2(%arg0: i32, %arg1: i32, %arg2: i32) -> (i32, i32, i32) {
    %c0_i32 = arith.constant 0 : i32
    %c0_i32_0 = arith.constant 0 : i32
    return %arg0, %arg2, %c0_i32 : i32, i32, i32
  }
  func.func @transform_3(%arg0: i32, %arg1: i32, %arg2: i32) -> (i32, i32, i32) {
    %c0_i32 = arith.constant 0 : i32
    %c0_i32_0 = arith.constant 0 : i32
    return %arg0, %arg1, %c0_i32 : i32, i32, i32
  }
}

</mosaic_0001>

<llo_original>
// kernel: tpu_custom_call.1
$region0: #{tpu_custom_call.1}
  #allocation0 [shape = 'u32[]', space=smem, size = 0x4, offset = 0x4, fixed_abs, tag = 'smem constant byte address 0x4 - core index']
  #allocation1 [shape = 'u32[72,128]{1,0:T(1,128)}', space=vmem, size = 0x9000, scoped, tag = 'internal scratch']
  #allocation2 [shape = 'f32[1,8,1]{2,1,0:T(8,128)}', space=vmem, size = 0x1000, scoped, tag = 'scratch operand']
  #allocation3 [shape = 'f32[1,8,1]{2,1,0:T(8,128)}', space=vmem, size = 0x1000, scoped, tag = 'scratch operand']
  #allocation4 [shape = 'f32[1,8,32]{2,1,0:T(8,128)}', space=vmem, size = 0x1000, scoped, tag = 'scratch operand']
  %s0 = inlined_call_operand.hbm [shape: f32[2,8,32], index: 0, kind: input, shape index: {}]
  %s1 = inlined_call_operand.hbm [shape: f32[2,8,32], index: 1, kind: input, shape index: {}]
  %s2 = inlined_call_operand.hbm [shape: f32[2,8,32], index: 2, kind: input, shape index: {}]
  %s3 = inlined_call_operand.hbm [shape: f32[2,8,32], index: 3, kind: output, shape index: {}]
  %s4 = sld [smem:[#allocation0]]
  $region65: #{tpu_custom_call.1} parent=0
    _
  %s6 = ssub.s32 1, %s4
  %s7 = scalar_select 0, %s6, %s4
  $region1: #{tpu_custom_call.1} parent=0
    #allocation5 [shape = 'u8[8192]{0}', space=vmem, size = 0x2000, scoped, tag = 'input window, operand 0']
    #allocation6 [shape = 's32[2]{0}', space=sflag, size = 0x8, scoped, tag = 'scoped memory for tpu_custom_call.1']
    #allocation7 [shape = 's32[2]{0}', space=sflag, size = 0x8, scoped, tag = 'scoped memory for tpu_custom_call.1']
    #allocation8 [shape = 'u8[8192]{0}', space=vmem, size = 0x2000, scoped, tag = 'input window, operand 1']
    #allocation9 [shape = 's32[2]{0}', space=sflag, size = 0x8, scoped, tag = 'scoped memory for tpu_custom_call.1']
    #allocation10 [shape = 'u8[8192]{0}', space=vmem, size = 0x2000, scoped, tag = 'input window, operand 2']
    #allocation11 [shape = 'u8[8192]{0}', space=vmem, size = 0x2000, scoped, tag = 'output window, operand 0']
    %8 = vsyncpa [#allocation6], 0
    %s9 = scalar_lea.sflag [#allocation6], 1
    %10 = vsyncpa %s9, 0
    %11 = vsyncpa [#allocation9], 0
    %s12 = scalar_lea.sflag [#allocation9], 1
    %13 = vsyncpa %s12, 0
    %14 = vsyncpa [#allocation7], 0
    %s15 = scalar_lea.sflag [#allocation7], 1
    %16 = vsyncpa %s15, 0
    loop: start=0, step=1, limit=4
    $region2: #{tpu_custom_call.1} parent=1 // loop_pre_header
      _
    $region3: #{tpu_custom_call.1} parent=1 // loop_header
      %s18 = sphi 0, %s22
      %p19 = scmp.ge.s32.totalorder %s18, 4
      %s25 = sphi 0, %s44
      %s26 = sphi 0, %s40
      %s27 = sphi 0, %s36
      %s28 = sphi 0, %s25
      %s29 = sphi 0, %s26
      %s30 = sphi 0, %s27
      %s31 = sphi 0, %s28
      %s32 = sphi 0, %s29
      %s33 = sphi 0, %s30
      %s49 = sphi 0, %s51
      %s52 = sphi 0, %s49
      %s53 = sphi 0, %s52
      %s69 = sphi 0, %s53
      %s77 = sphi 0, %s79
      %s80 = sphi 0, %s77
      %s81 = sphi 0, %s80
      %s97 = sphi 0, %s81
      %s105 = sphi 0, %s107
      %s108 = sphi 0, %s105
      %s109 = sphi 0, %s108
      %s125 = sphi 0, %s109
      %s133 = sphi 0, %s135
      %s136 = sphi 0, %s133
      %s137 = sphi 0, %s136
      %s153 = sphi 0, %s137
    $region4: #{tpu_custom_call.1} parent=1 // loop_header_branch
      %21 = sbr.rel (%p19) target = $region8
    $region5: #{tpu_custom_call.1} parent=1 // loop_body
      %s23 = ssub.s32 %s18, 1
      %s24 = ssub.s32 %s18, 2
      %s34 = sadd.s32 1, %s27
      %p35 = scmp.ge.s32.totalorder %s34, 1
      %s36 = scalar_select %p35, 0, %s34
      %s37 = sadd.s32 1, %s26
      %s38 = scalar_select %p35, %s37, %s26
      %p39 = scmp.ge.s32.totalorder %s38, 1
      %s40 = scalar_select %p39, 0, %s38
      %s41 = sadd.s32 1, %s25
      %s42 = scalar_select %p39, %s41, %s25
      %p43 = scmp.ge.s32.totalorder %s42, 2
      %s44 = scalar_select %p43, 0, %s42
      %s45 = ssub.s32 %s25, %s44
      %s46 = ssub.s32 %s26, %s40
      %s47 = sor.u32 %s45, %s46
      %p48 = scmp.eq.s32.totalorder %s47, 0
      %s50 = sadd.s32 %s49, 1
      %s51 = scalar_select %p48, %s49, %s50
      %p54 = pneg %p48
      %p55 = scmp.eq.s32.totalorder %s18, 1
      %p56 = por %p54, %p55
      %p57 = scmp.ne.s32.totalorder %s49, %s52
      %p58 = scmp.eq.s32.totalorder %s18, 0
      %p59 = por %p57, %p58
      %p60 = scmp.ne.s32.totalorder %s49, %s52
      %p61 = scmp.eq.s32.totalorder %s23, 1
      %p62 = por %p60, %p61
      %p63 = scmp.ne.s32.totalorder %s52, %s53
      %p64 = scmp.eq.s32.totalorder %s23, 0
      %p65 = por %p63, %p64
      %p66 = scmp.ne.s32.totalorder %s52, %s53
      %p67 = scmp.eq.s32.totalorder %s24, 1
      %p68 = por %p66, %p67
      %p70 = scmp.ne.s32.totalorder %s53, %s69
      %p71 = scmp.eq.s32.totalorder %s24, 0
      %p72 = por %p70, %p71
      %s73 = ssub.s32 %s25, %s44
      %s74 = ssub.s32 %s27, %s36
      %s75 = sor.u32 %s73, %s74
      %p76 = scmp.eq.s32.totalorder %s75, 0
      %s78 = sadd.s32 %s77, 1
      %s79 = scalar_select %p76, %s77, %s78
      %p82 = pneg %p76
      %p83 = scmp.eq.s32.totalorder %s18, 1
      %p84 = por %p82, %p83
      %p85 = scmp.ne.s32.totalorder %s77, %s80
      %p86 = scmp.eq.s32.totalorder %s18, 0
      %p87 = por %p85, %p86
      %p88 = scmp.ne.s32.totalorder %s77, %s80
      %p89 = scmp.eq.s32.totalorder %s23, 1
      %p90 = por %p88, %p89
      %p91 = scmp.ne.s32.totalorder %s80, %s81
      %p92 = scmp.eq.s32.totalorder %s23, 0
      %p93 = por %p91, %p92
      %p94 = scmp.ne.s32.totalorder %s80, %s81
      %p95 = scmp.eq.s32.totalorder %s24, 1
      %p96 = por %p94, %p95
      %p98 = scmp.ne.s32.totalorder %s81, %s97
      %p99 = scmp.eq.s32.totalorder %s24, 0
      %p100 = por %p98, %p99
      %s101 = ssub.s32 %s25, %s44
      %s102 = ssub.s32 %s27, %s36
      %s103 = sor.u32 %s101, %s102
      %p104 = scmp.eq.s32.totalorder %s103, 0
      %s106 = sadd.s32 %s105, 1
      %s107 = scalar_select %p104, %s105, %s106
      %p110 = pneg %p104
      %p111 = scmp.eq.s32.totalorder %s18, 1
      %p112 = por %p110, %p111
      %p113 = scmp.ne.s32.totalorder %s105, %s108
      %p114 = scmp.eq.s32.totalorder %s18, 0
      %p115 = por %p113, %p114
      %p116 = scmp.ne.s32.totalorder %s105, %s108
      %p117 = scmp.eq.s32.totalorder %s23, 1
      %p118 = por %p116, %p117
      %p119 = scmp.ne.s32.totalorder %s108, %s109
      %p120 = scmp.eq.s32.totalorder %s23, 0
      %p121 = por %p119, %p120
      %p122 = scmp.ne.s32.totalorder %s108, %s109
      %p123 = scmp.eq.s32.totalorder %s24, 1
      %p124 = por %p122, %p123
      %p126 = scmp.ne.s32.totalorder %s109, %s125
      %p127 = scmp.eq.s32.totalorder %s24, 0
      %p128 = por %p126, %p127
      %s129 = ssub.s32 %s25, %s44
      %s130 = ssub.s32 %s26, %s40
      %s131 = sor.u32 %s129, %s130
      %p132 = scmp.eq.s32.totalorder %s131, 0
      %s134 = sadd.s32 %s133, 1
      %s135 = scalar_select %p132, %s133, %s134
      %p138 = pneg %p132
      %p139 = scmp.eq.s32.totalorder %s18, 1
      %p140 = por %p138, %p139
      %p141 = scmp.ne.s32.totalorder %s133, %s136
      %p142 = scmp.eq.s32.totalorder %s18, 0
      %p143 = por %p141, %p142
      %p144 = scmp.ne.s32.totalorder %s133, %s136
      %p145 = scmp.eq.s32.totalorder %s23, 1
      %p146 = por %p144, %p145
      %p147 = scmp.ne.s32.totalorder %s136, %s137
      %p148 = scmp.eq.s32.totalorder %s23, 0
      %p149 = por %p147, %p148
      %p150 = scmp.ne.s32.totalorder %s136, %s137
      %p151 = scmp.eq.s32.totalorder %s24, 1
      %p152 = por %p150, %p151
      %p154 = scmp.ne.s32.totalorder %s137, %s153
      %p155 = scmp.eq.s32.totalorder %s24, 0
      %p156 = por %p154, %p155
      %p157 = scmp.le.s32.totalorder 1, %s18
      %p158 = scmp.lt.s32.totalorder %s18, 3
      %p159 = pnand %p157, %p158
      %p160 = pneg %p159
      // Predicated region
      $region9: #{tpu_custom_call.1} parent=5 // pred_check
        _
      $region10: #{tpu_custom_call.1} parent=5 // pred_check_branch
        %162 = sbr.rel (%p159) target = $region12
      $region11: #{tpu_custom_call.1} parent=5 // pred_region
        %s163 = ssub.s32 %s18, 1
      $region12: #{tpu_custom_call.1} parent=5 // pred_fallthru
        _
      %p164 = scmp.lt.s32.totalorder %s18, 2
      // Predicated region
      $region13: #{tpu_custom_call.1} parent=5 // pred_check
        %p165 = pneg %p164
      $region14: #{tpu_custom_call.1} parent=5 // pred_check_branch
        %167 = sbr.rel (%p165) target = $region16
      $region15: #{tpu_custom_call.1} parent=5 // pred_region
        // Predicated region
        $region17: #{tpu_custom_call.1} parent=15 // pred_check
          %p168 = pneg %p59
        $region18: #{tpu_custom_call.1} parent=15 // pred_check_branch
          %170 = sbr.rel (%p168) target = $region20
        $region19: #{tpu_custom_call.1} parent=15 // pred_region
          %s171 = sand.u32 %s49, 1
          %s172 = scalar_lea.sflag [#allocation6], %s171
          %s173 = sand.u32 %s49, 1
          %s174 = smul.addr %s173, 8
          %s175 = scalar_lea.vmem [#allocation5], %s174
          %177 = vsyncadd %s172, 0
          %s178 = sadd.s32 %s26, %s25
          %s179 = smul.addr %s178, 8
          %s180 = scalar_lea.hbm %s0, %s179
          %s182 = sshll.u32 %s180, 4
          %s183 = int_to_ptr.hbm [resolvable:$true] %s182
          %s184 = sshll.u32 %s175, 4
          %s185 = int_to_ptr.vmem [resolvable:$true] %s184
          %187 = dma.hbm_to_vmem [thread:$0]  %s183, 128, %s185, %s172
        $region20: #{tpu_custom_call.1} parent=15 // pred_fallthru
          _
        // Predicated region
        $region21: #{tpu_custom_call.1} parent=15 // pred_check
          %p188 = pneg %p87
        $region22: #{tpu_custom_call.1} parent=15 // pred_check_branch
          %190 = sbr.rel (%p188) target = $region24
        $region23: #{tpu_custom_call.1} parent=15 // pred_region
          %s191 = sand.u32 %s18, 1
          %s192 = scalar_lea.sflag [#allocation9], %s191
          %s193 = sand.u32 %s77, 1
          %s194 = smul.addr %s193, 8
          %s195 = scalar_lea.vmem [#allocation8], %s194
          %197 = vsyncadd %s192, 0
          %s198 = sadd.s32 %s27, %s25
          %s199 = smul.addr %s198, 8
          %s200 = scalar_lea.hbm %s1, %s199
          %s202 = sshll.u32 %s200, 4
          %s203 = int_to_ptr.hbm [resolvable:$true] %s202
          %s204 = sshll.u32 %s195, 4
          %s205 = int_to_ptr.vmem [resolvable:$true] %s204
          %207 = dma.hbm_to_vmem [thread:$0]  %s203, 128, %s205, %s192
        $region24: #{tpu_custom_call.1} parent=15 // pred_fallthru
          _
        // Predicated region
        $region25: #{tpu_custom_call.1} parent=15 // pred_check
          %p208 = pneg %p115
        $region26: #{tpu_custom_call.1} parent=15 // pred_check_branch
          %210 = sbr.rel (%p208) target = $region28
        $region27: #{tpu_custom_call.1} parent=15 // pred_region
          %s211 = sand.u32 %s18, 1
          %s212 = scalar_lea.sflag [#allocation9], %s211
          %s213 = sand.u32 %s105, 1
          %s214 = smul.addr %s213, 8
          %s215 = scalar_lea.vmem [#allocation10], %s214
          %217 = vsyncadd %s212, 0
          %s218 = sadd.s32 %s27, %s25
          %s219 = smul.addr %s218, 8
          %s220 = scalar_lea.hbm %s2, %s219
          %s222 = sshll.u32 %s220, 4
          %s223 = int_to_ptr.hbm [resolvable:$true] %s222
          %s224 = sshll.u32 %s215, 4
          %s225 = int_to_ptr.vmem [resolvable:$true] %s224
          %227 = dma.hbm_to_vmem [thread:$0]  %s223, 128, %s225, %s212
        $region28: #{tpu_custom_call.1} parent=15 // pred_fallthru
          _
      $region16: #{tpu_custom_call.1} parent=5 // pred_fallthru
        _
      %p228 = scmp.le.s32.totalorder 1, %s18
      %p229 = scmp.lt.s32.totalorder %s18, 3
      %p230 = pnand %p228, %p229
      %p231 = pneg %p230
      // Predicated region
      $region29: #{tpu_custom_call.1} parent=5 // pred_check
        _
      $region30: #{tpu_custom_call.1} parent=5 // pred_check_branch
        %233 = sbr.rel (%p230) target = $region32
      $region31: #{tpu_custom_call.1} parent=5 // pred_region
        %s234 = ssub.s32 %s18, 1
        %s235 = sand.u32 %s52, 1
        %s236 = scalar_lea.sflag [#allocation6], %s235
        %s237 = sand.u32 %s52, 1
        %s238 = smul.addr %s237, 8
        %s239 = scalar_lea.vmem [#allocation5], %s238
        // Predicated region
        $region33: #{tpu_custom_call.1} parent=31 // pred_check
          %p240 = pneg %p65
        $region34: #{tpu_custom_call.1} parent=31 // pred_check_branch
          %242 = sbr.rel (%p240) target = $region36
        $region35: #{tpu_custom_call.1} parent=31 // pred_region
          %244 = dma.done %s236, 128
        $region36: #{tpu_custom_call.1} parent=31 // pred_fallthru
          _
        %s245 = sand.u32 %s23, 1
        %s246 = scalar_lea.sflag [#allocation9], %s245
        %s247 = sand.u32 %s80, 1
        %s248 = smul.addr %s247, 8
        %s249 = scalar_lea.vmem [#allocation8], %s248
        // Predicated region
        $region37: #{tpu_custom_call.1} parent=31 // pred_check
          %p250 = pneg %p93
        $region38: #{tpu_custom_call.1} parent=31 // pred_check_branch
          %252 = sbr.rel (%p250) target = $region40
        $region39: #{tpu_custom_call.1} parent=31 // pred_region
          %254 = dma.done %s246, 128
        $region40: #{tpu_custom_call.1} parent=31 // pred_fallthru
          _
        %s255 = sand.u32 %s23, 1
        %s256 = scalar_lea.sflag [#allocation9], %s255
        %s257 = sand.u32 %s108, 1
        %s258 = smul.addr %s257, 8
        %s259 = scalar_lea.vmem [#allocation10], %s258
        // Predicated region
        $region41: #{tpu_custom_call.1} parent=31 // pred_check
          %p260 = pneg %p121
        $region42: #{tpu_custom_call.1} parent=31 // pred_check_branch
          %262 = sbr.rel (%p260) target = $region44
        $region43: #{tpu_custom_call.1} parent=31 // pred_region
          %264 = dma.done %s256, 128
        $region44: #{tpu_custom_call.1} parent=31 // pred_fallthru
          _
        %s265 = sand.u32 %s52, 1
        %s266 = scalar_lea.sflag [#allocation6], %s265
        %s267 = sand.u32 %s52, 1
        %s268 = smul.addr %s267, 8
        %s269 = scalar_lea.vmem [#allocation5], %s268
        %p270 = pneg %p65
        %p271 = pneg %p62
        %s272 = sand.u32 %s23, 1
        %s273 = scalar_lea.sflag [#allocation9], %s272
        %s274 = sand.u32 %s80, 1
        %s275 = smul.addr %s274, 8
        %s276 = scalar_lea.vmem [#allocation8], %s275
        %p277 = pneg %p93
        %p278 = pneg %p90
        %s279 = sand.u32 %s23, 1
        %s280 = scalar_lea.sflag [#allocation9], %s279
        %s281 = sand.u32 %s108, 1
        %s282 = smul.addr %s281, 8
        %s283 = scalar_lea.vmem [#allocation10], %s282
        %p284 = pneg %p121
        %p285 = pneg %p118
        %p286 = pneg %p149
        %p287 = pneg %p146
        %s288 = sand.u32 %s136, 1
        %s289 = scalar_lea.sflag [#allocation7], %s288
        %s290 = sand.u32 %s136, 1
        %s291 = smul.addr %s290, 8
        %s292 = scalar_lea.vmem [#allocation11], %s291
        %p293 = scmp.eq.s32.totalorder %s30, 0
        // Predicated region
        $region45: #{tpu_custom_call.1} parent=31 // pred_check
          %p294 = pneg %p293
        $region46: #{tpu_custom_call.1} parent=31 // pred_check_branch
          %296 = sbr.rel (%p294) target = $region48
        $region47: #{tpu_custom_call.1} parent=31 // pred_region
          %vm297 = vcmask 7168
          %298 = vst.msk [vmem:[#allocation2] sm:$0xff] %vm297, -inf
          %299 = vst.msk [vmem:[#allocation3] sm:$0xff] %vm297, 0.0
          %vm300 = vcmask 261120
          %301 = vst.msk [vmem:[#allocation4] sm:$0xff] %vm300, 0.0
        $region48: #{tpu_custom_call.1} parent=31 // pred_fallthru
          _
        %v302 = vld [vmem:[%s239] sm:$0xff]
        %v303 = vld [vmem:[%s249] sm:$0xff]
        %v304 = vld [vmem:[%s259] sm:$0xff]
        %vm305 = vcmask 261120
        %v307 = vsel %vm305, %v302, 0
        %v310 = vsel %vm305, %v303, 0
        %312 = vmatpush.xpose.msra.mxu0 0.0
        %313 = vmatpush.xpose.msra.mxu0 0.0
        %314 = vmatpush.xpose.msra.mxu0 0.0
        %315 = vmatpush.xpose.msra.mxu0 0.0
        %316 = vmatpush.xpose.msra.mxu0 0.0
        %317 = vmatpush.xpose.msra.mxu0 0.0
        %318 = vmatpush.xpose.msra.mxu0 0.0
        %319 = vmatpush.xpose.msra.mxu0 0.0
        %320 = vmatpush.xpose.msra.mxu0 0.0
        %321 = vmatpush.xpose.msra.mxu0 0.0
        %322 = vmatpush.xpose.msra.mxu0 0.0
        %323 = vmatpush.xpose.msra.mxu0 0.0
        %324 = vmatpush.xpose.msra.mxu0 0.0
        %325 = vmatpush.xpose.msra.mxu0 0.0
        %326 = vmatpush.xpose.msra.mxu0 0.0
        %327 = vmatpush.xpose.msra.mxu0 %v310
        %328 = vmatmul.f32.gmra.mxu0 %v307
        %v329 = vpop.f32.mrf.mxu0
        %v330 = vadd.f32 0.0, %v329
        %331 = vdwg.mxu0
        %v332 = vld [vmem:[#allocation2] sm:$0xff]
        %vm333 = vcmask 64512
        %v334 = vsel %vm333, %v330, -inf
        %335 = vmax.xlane.f32.xlu0 %v334
        %v336 = vpop.xlane.xlu0 %335
        %v337 = vmax.f32 %v332, %v336
        %v338 = vsub.f32 %v332, %v337
        %v339 = vmul.f32 %v338, 1.442695
        %v340 = vpow.pop %v339
        %342 = vset.pattern.permute.xlu0 0
        %343 = vperm.xlu0 %342, %v337
        %v344 = vpop.permute.xlu0 %343
        %v346 = vsub.f32 %v330, %v344
        %v347 = vmul.f32 %v346, 1.442695
        %v348 = vpow.pop %v347
        %v349 = vld [vmem:[#allocation3] sm:$0xff]
        %v350 = vmul.f32 %v340, %v349
        %v351 = vsel %vm333, %v348, 0.0
        %352 = vadd.xlane.f32.xlu0 %v351
        %v353 = vpop.xlane.xlu0 %352
        %v354 = vadd.f32 %v350, %v353
        %vm355 = vcmask 7168
        %356 = vst.msk [vmem:[#allocation3] sm:$0xff] %vm355, %v354
        %v357 = vld [vmem:[#allocation4] sm:$0xff]
        %359 = vset.pattern.permute.xlu0 0
        %360 = vperm.xlu0 %359, %v340
        %v361 = vpop.permute.xlu0 %360
        %v363 = vmul.f32 %v361, %v357
        %v365 = vsel %vm333, %v348, 0
        %367 = vmatpush.msra.mxu0 0.0
        %368 = vmatpush.msra.mxu0 0.0
        %369 = vmatpush.msra.mxu0 0.0
        %370 = vmatpush.msra.mxu0 0.0
        %371 = vmatpush.msra.mxu0 0.0
        %372 = vmatpush.msra.mxu0 0.0
        %373 = vmatpush.msra.mxu0 0.0
        %374 = vmatpush.msra.mxu0 0.0
        %375 = vmatpush.msra.mxu0 0.0
        %376 = vmatpush.msra.mxu0 0.0
        %377 = vmatpush.msra.mxu0 0.0
        %378 = vmatpush.msra.mxu0 0.0
        %379 = vmatpush.msra.mxu0 0.0
        %380 = vmatpush.msra.mxu0 0.0
        %381 = vmatpush.msra.mxu0 0.0
        %382 = vmatpush.msra.mxu0 %v304
        %383 = vmatmul.f32.gmra.mxu0 %v365
        %v384 = vpop.f32.mrf.mxu0
        %v385 = vadd.f32 0.0, %v384
        %386 = vdwg.mxu0
        %v387 = vadd.f32 %v363, %v385
        %388 = vst.msk [vmem:[#allocation4] sm:$0xff] %vm305, %v387
        %389 = vst.msk [vmem:[#allocation2] sm:$0xff] %vm355, %v337
        // Predicated region
        $region49: #{tpu_custom_call.1} parent=31 // pred_check
          %p390 = pneg %p293
        $region50: #{tpu_custom_call.1} parent=31 // pred_check_branch
          %392 = sbr.rel (%p390) target = $region52
        $region51: #{tpu_custom_call.1} parent=31 // pred_region
          %v393 = vld [vmem:[#allocation4] sm:$0xff]
          %v394 = vld [vmem:[#allocation3] sm:$0xff]
          %v395 = vrcp.pop %v394
          %v396 = vmul.f32 %v394, %v395
          %v397 = vsub.f32 1.0, %v396
          %v398 = vmul.f32 %v395, %v397
          %v399 = vadd.f32 %v395, %v398
          %vm400 = vweird.f32 %v394
          %vm401 = vweird.f32 %v395
          %vm402 = vmor %vm400, %vm401
          %v403 = vsel %vm402, %v395, %v399
          %v404 = vand.u32 2147483647, %v394
          %vm405 = vcmp.eq.f32.partialorder %v404, 8.507059e+37
          %v406 = vand.u32 %v394, 2147483648
          %v407 = vor.u32 1.1754944e-38, %v406
          %v408 = vsel %vm405, %v407, %v403
          %v409 = vmul.f32 0.17677669, %v408
          %411 = vset.pattern.permute.xlu0 0
          %412 = vperm.xlu0 %411, %v409
          %v413 = vpop.permute.xlu0 %412
          %v415 = vmul.f32 %v393, %v413
          %416 = vst.msk [vmem:[%s292] sm:$0xff] %vm305, %v415
        $region52: #{tpu_custom_call.1} parent=31 // pred_fallthru
          _
        %s417 = sand.u32 %s136, 1
        %s418 = scalar_lea.sflag [#allocation7], %s417
        %s419 = sand.u32 %s136, 1
        %s420 = smul.addr %s419, 8
        %s421 = scalar_lea.vmem [#allocation11], %s420
        // Predicated region
        $region53: #{tpu_custom_call.1} parent=31 // pred_check
          %p422 = pneg %p146
        $region54: #{tpu_custom_call.1} parent=31 // pred_check_branch
          %424 = sbr.rel (%p422) target = $region56
        $region55: #{tpu_custom_call.1} parent=31 // pred_region
          %426 = vsyncadd %s418, 0
          %s427 = sadd.s32 %s29, %s28
          %s428 = smul.addr %s427, 8
          %s429 = scalar_lea.hbm %s3, %s428
          %s431 = sshll.u32 %s421, 4
          %s432 = int_to_ptr.vmem [resolvable:$true] %s431
          %s433 = sshll.u32 %s429, 4
          %s434 = int_to_ptr.hbm [resolvable:$true] %s433
          %436 = dma.vmem_to_hbm [thread:$0]  %s432, 128, %s434, %s418
        $region56: #{tpu_custom_call.1} parent=31 // pred_fallthru
          _
      $region32: #{tpu_custom_call.1} parent=5 // pred_fallthru
        _
      %p437 = scmp.le.s32.totalorder 2, %s18
      // Predicated region
      $region57: #{tpu_custom_call.1} parent=5 // pred_check
        %p438 = pneg %p437
      $region58: #{tpu_custom_call.1} parent=5 // pred_check_branch
        %440 = sbr.rel (%p438) target = $region60
      $region59: #{tpu_custom_call.1} parent=5 // pred_region
        %s441 = ssub.s32 %s18, 2
        // Predicated region
        $region61: #{tpu_custom_call.1} parent=59 // pred_check
          %p442 = pneg %p152
        $region62: #{tpu_custom_call.1} parent=59 // pred_check_branch
          %444 = sbr.rel (%p442) target = $region64
        $region63: #{tpu_custom_call.1} parent=59 // pred_region
          %s445 = sand.u32 %s137, 1
          %s446 = scalar_lea.sflag [#allocation7], %s445
          %s447 = sand.u32 %s137, 1
          %s448 = smul.addr %s447, 8
          %s449 = scalar_lea.vmem [#allocation11], %s448
          %451 = dma.done %s446, 128
        $region64: #{tpu_custom_call.1} parent=59 // pred_fallthru
          _
      $region60: #{tpu_custom_call.1} parent=5 // pred_fallthru
        _
    $region6: #{tpu_custom_call.1} parent=1 // loop_footer
      %s22 = sadd.s32 1, %s18
    $region7: #{tpu_custom_call.1} parent=1 // loop_footer_branch
      %17 = sbr.rel target = $region3
    $region8: #{tpu_custom_call.1} parent=1 // loop_exit
      _
    %452 = vsyncpa [#allocation6], 1
    %s453 = scalar_lea.sflag [#allocation6], 1
    %454 = vsyncpa %s453, 1
    %455 = vsyncpa [#allocation9], 1
    %s456 = scalar_lea.sflag [#allocation9], 1
    %457 = vsyncpa %s456, 1
    %458 = vsyncpa [#allocation7], 1
    %s459 = scalar_lea.sflag [#allocation7], 1
    %460 = vsyncpa %s459, 1

</llo_original>
